<compile_context>
chip_gen: v5e
topology: v5e:2x2
jax: 0.10.0
libtpu: 0.0.40
codegen_flags: <defaults>
</compile_context>

<pallas_src>
import functools
import math

import jax
import jax.numpy as jnp
from jax import lax
from jax.experimental import pallas as pl
from jax.experimental.pallas import tpu as pltpu


# ----------------------------------------------------------------------------
# Generation-aware VMEM budget (v7x has 64 MiB, v5e/v6e 128 MiB).
# ----------------------------------------------------------------------------
@functools.lru_cache(maxsize=None)
def _vmem_limit_bytes():
    cap = 128 * 1024 * 1024
    try:
        info = pltpu.get_tpu_info()
        cap = int(getattr(info, "vmem_capacity_bytes", cap))
    except Exception:
        pass
    return int(max(32 * 1024 * 1024,
                   min(cap - 16 * 1024 * 1024, 96 * 1024 * 1024)))


# ----------------------------------------------------------------------------
# Pallas kernel 1: tiled bf16 matmul + bias + activation (+ fused multiply)
# ----------------------------------------------------------------------------
_SMALL_MATMUL = 1 << 20          # below this M*K*N, use plain XLA dot


def _round_up(v, m):
    return (v + m - 1) // m * m


def _pick_tile(size, align, max_tile, candidates, slack=0.125):
    """Pick a tile for one matmul dim; single tile if the dim is small."""
    base = _round_up(size, align)
    if base <= max_tile:
        return base, base                       # whole dim in one block
    limit = base + max(int(base * slack), align)
    for c in candidates:
        padded = _round_up(size, c)
        if padded <= limit:
            return c, padded
    return candidates[-1], _round_up(size, candidates[-1])


def _mm_kernel(*refs, act, has_mul):
    if has_mul:
        x_ref, w_ref, b_ref, m_ref, o_ref, acc_ref = refs
    else:
        x_ref, w_ref, b_ref, o_ref, acc_ref = refs
        m_ref = None

    @pl.when(pl.program_id(2) == 0)
    def _():
        acc_ref[...] = jnp.zeros_like(acc_ref)

    acc_ref[...] += jnp.dot(x_ref[...], w_ref[...],
                            preferred_element_type=jnp.float32)

    @pl.when(pl.program_id(2) == pl.num_programs(2) - 1)
    def _():
        r = acc_ref[...] + b_ref[...]
        if act == "relu":
            r = jnp.maximum(r, 0.0)
        elif act == "sigmoid":
            # numerically stable sigmoid; reciprocal runs on the EUP slot.
            z = jnp.exp(-jnp.abs(r))
            inv = pl.reciprocal(1.0 + z, approx=True)
            r = jnp.where(r >= 0, inv, z * inv)
        if m_ref is not None:
            r = r * m_ref[...].astype(jnp.float32)
        o_ref[...] = r.astype(o_ref.dtype)


def pallas_matmul(x, w, bias=None, act="none", out_dtype=jnp.bfloat16, mul=None):
    """out_dtype(act(x @ w + bias) [* mul]) with bf16 MXU operands, f32 acc."""
    M, K = x.shape
    K2, N = w.shape
    assert K == K2
    b = jnp.zeros((N,), jnp.float32) if bias is None else bias.astype(jnp.float32)

    if M < 128 or N < 64 or M * N * K <= _SMALL_MATMUL:
        # Tiny / skinny problem: launch + padding overhead would dominate.
        r = jnp.dot(x.astype(jnp.bfloat16), w.astype(jnp.bfloat16),
                    preferred_element_type=jnp.float32) + b[None, :]
        if act == "relu":
            r = jnp.maximum(r, 0.0)
        elif act == "sigmoid":
            r = jax.nn.sigmoid(r)
        if mul is not None:
            r = r * mul.astype(jnp.float32)
        return r.astype(out_dtype)

    tm, Mp = _pick_tile(M, 8, 256, (256, 128), slack=0.3)
    tn, Np = _pick_tile(N, 128, 512, (512, 256, 128), slack=0.25)
    tk, Kp = _pick_tile(K, 128, 1024, (1024, 512, 256, 128), slack=0.125)
    # Keep >=2 parallel blocks so both v7x TensorCores get work.
    if (Mp // tm) * (Np // tn) < 2 and tm % 2 == 0 and (tm // 2) % 8 == 0:
        tm //= 2

    xp = x.astype(jnp.bfloat16)
    if (Mp, Kp) != (M, K):
        xp = jnp.pad(xp, ((0, Mp - M), (0, Kp - K)))
    wp = w.astype(jnp.bfloat16)
    if (Kp, Np) != (K, N):
        wp = jnp.pad(wp, ((0, Kp - K), (0, Np - N)))
    bp = (jnp.pad(b, (0, Np - N)) if Np != N else b).reshape(1, Np)

    in_specs = [pl.BlockSpec((tm, tk), lambda i, j, k: (i, k)),
                pl.BlockSpec((tk, tn), lambda i, j, k: (k, j)),
                pl.BlockSpec((1, tn), lambda i, j, k: (0, j))]
    args = [xp, wp, bp]
    has_mul = mul is not None
    if has_mul:
        mp = mul.astype(jnp.bfloat16)
        if (Mp, Np) != (M, N):
            mp = jnp.pad(mp, ((0, Mp - M), (0, Np - N)))
        in_specs.append(pl.BlockSpec((tm, tn), lambda i, j, k: (i, j)))
        args.append(mp)

    out = pl.pallas_call(
        functools.partial(_mm_kernel, act=act, has_mul=has_mul),
        out_shape=jax.ShapeDtypeStruct((Mp, Np), out_dtype),
        grid_spec=pltpu.PrefetchScalarGridSpec(
            num_scalar_prefetch=0,
            grid=(Mp // tm, Np // tn, Kp // tk),
            in_specs=in_specs,
            out_specs=pl.BlockSpec((tm, tn), lambda i, j, k: (i, j)),
            scratch_shapes=[pltpu.VMEM((tm, tn), jnp.float32)]),
        compiler_params=pltpu.CompilerParams(
            dimension_semantics=("parallel", "parallel", "arbitrary"),
            vmem_limit_bytes=_vmem_limit_bytes()),
    )(*args)
    if (Mp, Np) != (M, N):
        out = out[:M, :N]
    return out


# ----------------------------------------------------------------------------
# Pallas kernel 2: IQFM cross-modal attention
#   softmax(Q (K1+K2)^T / scale) V, k1+k2 fused in-kernel, bf16 output.
# ----------------------------------------------------------------------------
def _iqfm_attn_kernel(q_ref, k1_ref, k2_ref, v_ref, o_ref, *, scale):
    q = q_ref[0]                                          # (tq, C) bf16
    k = k1_ref[0] + k2_ref[0]                             # (N, C) bf16
    s = lax.dot_general(q, k, (((1,), (1,)), ((), ())),
                        preferred_element_type=jnp.float32) * (1.0 / scale)
    s = s - jnp.max(s, axis=-1, keepdims=True)
    e = jnp.exp(s)
    attn = e * pl.reciprocal(jnp.sum(e, axis=-1, keepdims=True), approx=True)
    o_ref[0] = jnp.dot(attn.astype(v_ref.dtype), v_ref[0],
                       preferred_element_type=jnp.float32).astype(o_ref.dtype)


def iqfm_attention(q, k1, k2, v, scale):
    """q, k1, k2, v: (B, N, C) -> (B, N, C) bf16."""
    B, N, C = q.shape
    if N < 8 or N * C < 4096:
        # Tiny levels: launch overhead dominates -> XLA path.
        qf, k1f, k2f, vf = (t.astype(jnp.float32) for t in (q, k1, k2, v))
        s = jnp.einsum("bqc,bkc->bqk", qf, k1f + k2f) / scale
        a = jax.nn.softmax(s, axis=-1)
        return jnp.einsum("bqk,bkc->bqc", a, vf).astype(jnp.bfloat16)

    # TODO(synk): at production N (>=2k) switch to flash-style key tiling with
    #             online softmax; whole-N key blocks are fine at these sizes.
    tq = N if (N % 256 != 0 or N <= 256) else 256
    q_spec = pl.BlockSpec((1, tq, C), lambda b, qi: (b, qi, 0))
    kv_spec = pl.BlockSpec((1, N, C), lambda b, qi: (b, 0, 0))
    return pl.pallas_call(
        functools.partial(_iqfm_attn_kernel, scale=scale),
        out_shape=jax.ShapeDtypeStruct((B, N, C), jnp.bfloat16),
        grid_spec=pltpu.PrefetchScalarGridSpec(
            num_scalar_prefetch=0, grid=(B, N // tq),
            in_specs=[q_spec, kv_spec, kv_spec, kv_spec],
            out_specs=q_spec),
        compiler_params=pltpu.CompilerParams(
            dimension_semantics=("parallel", "parallel"),
            vmem_limit_bytes=_vmem_limit_bytes()),
    )(q.astype(jnp.bfloat16), k1.astype(jnp.bfloat16),
      k2.astype(jnp.bfloat16), v.astype(jnp.bfloat16))


# ----------------------------------------------------------------------------
# Pallas kernel 3: per-pixel channel max + mean (ISQAM spatial-score input)
# ----------------------------------------------------------------------------
def _chan_stats_kernel(x_ref, o_ref):
    x = x_ref[0].astype(jnp.float32)                      # (HW, C)
    mx = jnp.max(x, axis=-1, keepdims=True)
    mn = jnp.mean(x, axis=-1, keepdims=True)
    # Single store for both stats (kernel is read-bound: C lanes in, 2 out).
    o_ref[0] = jnp.concatenate([mx, mn], axis=-1).astype(o_ref.dtype)


def channel_max_mean(x):
    """(B,H,W,C) -> (B,H,W,2) holding [channel-max, channel-mean] (bf16)."""
    B, H, W, C = x.shape
    stats = pl.pallas_call(
        _chan_stats_kernel,
        out_shape=jax.ShapeDtypeStruct((B, H * W, 2), jnp.bfloat16),
        grid_spec=pltpu.PrefetchScalarGridSpec(
            num_scalar_prefetch=0, grid=(B,),
            in_specs=[pl.BlockSpec((1, H * W, C), lambda b: (b, 0, 0))],
            out_specs=pl.BlockSpec((1, H * W, 2), lambda b: (b, 0, 0))),
        compiler_params=pltpu.CompilerParams(
            dimension_semantics=("parallel",),
            vmem_limit_bytes=_vmem_limit_bytes()),
    )(x.reshape(B, H * W, C))
    return stats.reshape(B, H, W, 2)


# ----------------------------------------------------------------------------
# JAX glue: conv-as-im2col, bilinear resize, max pool
# ----------------------------------------------------------------------------
def conv_apply(p, x, out_dtype=jnp.bfloat16):
    """x: (B,H,W,Cin) NHWC; p: prepared conv (BN folded, bf16 im2col weights)."""
    kh, kw = p["kh"], p["kw"]
    stride, (ph, pw), (dh, dw) = p["stride"], p["padding"], p["dilation"]
    B, H, W, Cin = x.shape
    x = x.astype(jnp.bfloat16)
    if kh == 1 and kw == 1 and stride == 1 and ph == 0 and pw == 0:
        patches = x.reshape(B * H * W, Cin)
        Ho, Wo = H, W
    else:
        xp = jnp.pad(x, ((0, 0), (ph, ph), (pw, pw), (0, 0)))
        Hp, Wp = xp.shape[1], xp.shape[2]
        Ho = (Hp - ((kh - 1) * dh + 1)) // stride + 1
        Wo = (Wp - ((kw - 1) * dw + 1)) // stride + 1
        # TODO(synk): im2col (bf16) is still materialized; fusing the tap loop
        #             into the matmul K-grid would cut input HBM traffic ~kh*kw x.
        cols = [xp[:, i * dh: i * dh + (Ho - 1) * stride + 1: stride,
                   j * dw: j * dw + (Wo - 1) * stride + 1: stride, :]
                for i in range(kh) for j in range(kw)]
        patches = jnp.concatenate(cols, axis=-1).reshape(B * Ho * Wo, kh * kw * Cin)
    O = p["wmat"].shape[1]
    y = pallas_matmul(patches, p["wmat"], p["b"], act=p["act"], out_dtype=out_dtype)
    return y.reshape(B, Ho, Wo, O)


def _src_coords(in_size, out_size, align_corners):
    o = jnp.arange(out_size, dtype=jnp.float32)
    if align_corners:
        src = jnp.zeros_like(o) if out_size == 1 else o * (in_size - 1) / (out_size - 1)
    else:
        src = (o + 0.5) * (in_size / out_size) - 0.5
        src = jnp.clip(src, 0.0, float(max(in_size - 1, 0)))
    lo = jnp.floor(src).astype(jnp.int32)
    hi = jnp.minimum(lo + 1, in_size - 1)
    frac = src - lo.astype(jnp.float32)
    return lo, hi, frac


def resize_bilinear(x, out_h, out_w, align_corners):
    B, H, W, C = x.shape
    hl, hh, hf = _src_coords(H, out_h, align_corners)
    wl, wh, wf = _src_coords(W, out_w, align_corners)
    dt = x.dtype
    hf = hf.astype(dt)
    wf = wf.astype(dt)
    one = jnp.ones((), dt)
    top = (jnp.take(x, hl, axis=1) * (one - hf)[None, :, None, None]
           + jnp.take(x, hh, axis=1) * hf[None, :, None, None])
    out = (jnp.take(top, wl, axis=2) * (one - wf)[None, None, :, None]
           + jnp.take(top, wh, axis=2) * wf[None, None, :, None])
    return out


def up_true(x, s):
    return resize_bilinear(x, x.shape[1] * s, x.shape[2] * s, True)


def up_false(x, s):
    return resize_bilinear(x, x.shape[1] * s, x.shape[2] * s, False)


def maxpool2x2(x):
    return lax.reduce_window(x, jnp.array(-jnp.inf, x.dtype), lax.max,
                             (1, 2, 2, 1), (1, 2, 2, 1), "VALID")


# ----------------------------------------------------------------------------
# Deterministic parameter construction (BN folded, im2col weights precomputed)
# ----------------------------------------------------------------------------
class ParamGen:
    def __init__(self, key):
        self._key = key

    def normal(self, shape):
        self._key, sub = jax.random.split(self._key)
        return jax.random.normal(sub, shape, jnp.float32)


def make_bn(c):
    return {"gamma": jnp.ones((c,), jnp.float32), "beta": jnp.zeros((c,), jnp.float32),
            "mean": jnp.zeros((c,), jnp.float32), "var": jnp.ones((c,), jnp.float32)}


def prep_conv(pg, cin, cout, kh, kw, *, bias=True, bn=False, act="none",
              stride=1, padding=(0, 0), dilation=(1, 1), eps=1e-5):
    w = pg.normal((cout, cin, kh, kw)) / math.sqrt(cin * kh * kw)
    b = pg.normal((cout,)) * 0.01 if bias else jnp.zeros((cout,), jnp.float32)
    if bn:
        bnp = make_bn(cout)
        s = bnp["gamma"] * lax.rsqrt(bnp["var"] + eps)
        w = w * s[:, None, None, None]
        b = b * s + bnp["beta"] - bnp["mean"] * s
    wmat = jnp.transpose(w, (2, 3, 1, 0)).reshape(kh * kw * cin, cout)
    return {"wmat": wmat.astype(jnp.bfloat16), "b": b.astype(jnp.float32),
            "kh": kh, "kw": kw, "stride": stride, "padding": padding,
            "dilation": dilation, "act": act}


def _merge_1x1(convs):
    """Merge several 1x1 convs that share the same input into one matmul."""
    return {"wmat": jnp.concatenate([c["wmat"] for c in convs], axis=1),
            "b": jnp.concatenate([c["b"] for c in convs]),
            "kh": 1, "kw": 1, "stride": 1, "padding": (0, 0),
            "dilation": (1, 1), "act": "none"}


def make_final(pg, cin, cmid):
    return {"c1": prep_conv(pg, cin, cmid, 3, 3, bn=True, act="relu", padding=(1, 1)),
            "c2": prep_conv(pg, cmid, 1, 1, 1)}


def final_fwd(p, x):
    return conv_apply(p["c2"], conv_apply(p["c1"], x), out_dtype=jnp.float32)


# ------------------------------- ISQAM --------------------------------------
def make_isqam(pg, cin, cout):
    p = {}
    for m in ("rgb", "thermal", "depth"):
        p[m + "_feat"] = prep_conv(pg, cin, cout, 3, 3, bn=True, act="relu",
                                   padding=(1, 1))
        p[m + "_score"] = prep_conv(pg, 2, 1, 7, 7, bias=False, act="sigmoid",
                                    padding=(3, 3))
    return p


def isqam_fwd(p, xs):
    feats = [conv_apply(p[m + "_feat"], xi)
             for m, xi in zip(("rgb", "thermal", "depth"), xs)]
    scores = [conv_apply(p[m + "_score"], channel_max_mean(f))
              for m, f in zip(("rgb", "thermal", "depth"), feats)]
    return feats, scores


# ------------------------------- IQFM ---------------------------------------
def make_iqfm(pg, cin, cout):
    def w1x1(n_out):
        w = pg.normal((n_out, cin)) / math.sqrt(cin)      # (O, I)
        b = pg.normal((n_out,)) * 0.01
        return jnp.transpose(w), b                        # (I, O)

    p = {"qkv": {}}
    for m in ("rgb", "depth", "thermal"):
        wq, bq = w1x1(cin)
        wk, bk = w1x1(cin)
        wv, bv = w1x1(cin)
        # Fused Q/K/V projection weights: (C, 3C), columns ordered [q | k | v].
        p["qkv"][m] = {"w": jnp.concatenate([wq, wk, wv], axis=1).astype(jnp.bfloat16),
                       "b": jnp.concatenate([bq, bk, bv])}
    wg, bg = w1x1(cin)
    wo, bo = w1x1(cout)
    p["gate_w"], p["gate_b"] = wg.astype(jnp.bfloat16), bg
    p["out_w"], p["out_b"] = wo.astype(jnp.bfloat16), bo
    return p


def iqfm_fwd(p, xs, ss):
    xr, xt, xd = xs
    sr, st, sd = ss
    B, H, W, C = xr.shape
    N = H * W

    def qkv(m, x, s):
        # One (B*N, C) @ (C, 3C) bf16 matmul per modality instead of three.
        y = pallas_matmul(x.reshape(B * N, C), p["qkv"][m]["w"], p["qkv"][m]["b"],
                          out_dtype=jnp.bfloat16).reshape(B, N, 3 * C)
        sf = s.reshape(B, N, 1).astype(jnp.bfloat16)
        return y[:, :, :C] * sf, y[:, :, C:2 * C] * sf, y[:, :, 2 * C:]

    qr, kr, vr = qkv("rgb", xr, sr)
    qt, kt, vt = qkv("thermal", xt, st)
    qd, kd, vd = qkv("depth", xd, sd)

    scale = float(C) ** 0.5
    w_rgb = iqfm_attention(qr, kd, kt, vr, scale)
    w_depth = iqfm_attention(qd, kr, kt, vd, scale)
    w_thermal = iqfm_attention(qt, kr, kd, vt, scale)

    # Shared-weight gating conv: one stacked matmul with sigmoid(.) * x fused
    # into the epilogue (no separate gate tensor written to / read from HBM).
    stacked = jnp.concatenate([w_rgb, w_depth, w_thermal], axis=0).reshape(3 * B * N, C)
    gated = pallas_matmul(stacked, p["gate_w"], p["gate_b"], act="sigmoid",
                          out_dtype=jnp.bfloat16, mul=stacked).reshape(3 * B, N, C)
    fused = gated[:B] + gated[B:2 * B] + gated[2 * B:]
    out = pallas_matmul(fused.reshape(B * N, C), p["out_w"], p["out_b"],
                        out_dtype=jnp.bfloat16)
    return out.reshape(B, H, W, -1)


# ------------------------------- FASPP --------------------------------------
_BR1 = [((1, 3), (0, 1), (1, 1)), ((3, 1), (1, 0), (1, 1)),
        ((1, 3), (0, 3), (3, 3)), ((3, 1), (3, 0), (3, 3))]
_BR2 = [((1, 5), (0, 2), (1, 1)), ((5, 1), (2, 0), (1, 1)),
        ((1, 3), (0, 5), (5, 5)), ((3, 1), (5, 0), (5, 5))]
_BR3 = [((1, 7), (0, 3), (1, 1)), ((7, 1), (3, 0), (1, 1)),
        ((1, 3), (0, 7), (7, 7)), ((3, 1), (7, 0), (7, 7))]


def make_faspp(pg, cin, cout):
    def branch(specs):
        return [prep_conv(pg, cout, cout, kh, kw, bias=False, bn=True,
                          padding=pad, dilation=dil)
                for (kh, kw), pad, dil in specs]
    b0 = prep_conv(pg, cin, cout, 1, 1, bias=False, bn=True)
    b1 = prep_conv(pg, cin, cout, 1, 1, bias=False, bn=True)
    b2 = prep_conv(pg, cin, cout, 1, 1, bias=False, bn=True)
    b3 = prep_conv(pg, cin, cout, 1, 1, bias=False, bn=True)
    res = prep_conv(pg, cin, cout, 1, 1, bias=False, bn=True)
    return {
        # 5 shared-input 1x1 convs merged into a single (cin -> 5*cout) matmul.
        "stem": _merge_1x1([b0, b1, b2, b3, res]),
        "cout": cout,
        "branch1_1": branch(_BR1), "branch2_1": branch(_BR2), "branch3_1": branch(_BR3),
        "gp_conv": prep_conv(pg, cin, cout, 1, 1, bias=False, act="relu"),
        "conv_cat": prep_conv(pg, 5 * cout, cout, 3, 3, bias=False, bn=True,
                              padding=(1, 1)),
    }


def faspp_fwd(p, x):
    B, H, W, _ = x.shape
    cout = p["cout"]

    def run_branch(plist, xb):
        for cp in plist:
            xb = conv_apply(cp, xb)
        return xb

    stem = conv_apply(p["stem"], x)           # (B,H,W,5*cout): [b0|b1_0|b2_0|b3_0|res]
    x0 = stem[..., 0:cout]
    x1 = run_branch(p["branch1_1"], stem[..., cout:2 * cout] + x0)
    x2 = run_branch(p["branch2_1"], stem[..., 2 * cout:3 * cout] + x1)
    x3 = run_branch(p["branch3_1"], stem[..., 3 * cout:4 * cout] + x2)
    res = stem[..., 4 * cout:5 * cout]
    g = jnp.mean(x.astype(jnp.float32), axis=(1, 2), keepdims=True)
    g = conv_apply(p["gp_conv"], g)
    g = resize_bilinear(g, H, W, align_corners=False)
    x_cat = conv_apply(p["conv_cat"], jnp.concatenate([x0, x1, x2, x3, g], axis=-1))
    # TODO(synk): MultiSpectralAttentionLayer source not provided -> identity.
    return jax.nn.relu(x_cat + res)


# ------------------------------- RefUnet ------------------------------------
def make_refunet(pg, in_ch, inc_ch):
    p = {"conv0": prep_conv(pg, in_ch, inc_ch, 3, 3, padding=(1, 1))}
    p["enc"] = []
    cin = inc_ch
    for _ in range(5):
        p["enc"].append(prep_conv(pg, cin, 64, 3, 3, bn=True, act="relu",
                                  padding=(1, 1)))
        cin = 64
    p["dec"] = [prep_conv(pg, 128, 64, 3, 3, bn=True, act="relu", padding=(1, 1))
                for _ in range(4)]
    p["conv_d0"] = prep_conv(pg, 64, 1, 3, 3, padding=(1, 1))
    p["conv_out"] = prep_conv(pg, in_ch, 1, 3, 3, padding=(1, 1))
    return p


def refunet_fwd(p, x):
    hx = conv_apply(p["conv0"], x)
    enc = []
    for i in range(5):
        h = conv_apply(p["enc"][i], hx)
        enc.append(h)
        hx = maxpool2x2(h) if i < 4 else h
    hx1, hx2, hx3, hx4, hx5 = enc
    hx = up_false(hx5, 2)
    d = None
    for i, skip in enumerate([hx4, hx3, hx2, hx1]):
        d = conv_apply(p["dec"][i], jnp.concatenate([hx, skip], axis=-1))
        if i < 3:
            hx = up_false(d, 2)
    residual = conv_apply(p["conv_d0"], d)
    return conv_apply(p["conv_out"], x + residual, out_dtype=jnp.float32)


# ----------------------------- Swin stub backbone ----------------------------
def make_swin_stub(pg):
    # TODO(synk): stand-in for SwinTransformer(embed_dim=128, depths=[2,2,18,2]);
    #             backbone source was not provided.
    return {"patch": prep_conv(pg, 3, 128, 4, 4, act="relu", stride=4),
            "down1": prep_conv(pg, 128, 256, 2, 2, act="relu", stride=2),
            "down2": prep_conv(pg, 256, 512, 2, 2, act="relu", stride=2),
            "down3": prep_conv(pg, 512, 1024, 2, 2, act="relu", stride=2)}


def swin_stub_fwd(p, x):
    f1 = conv_apply(p["patch"], x)
    f2 = conv_apply(p["down1"], f1)
    f3 = conv_apply(p["down2"], f2)
    f4 = conv_apply(p["down3"], f3)
    return [f1, f2, f3, f4]


# ------------------------------- IQFNet --------------------------------------
def make_iqfnet_params(key):
    pg = ParamGen(key)
    return {
        "swin": make_swin_stub(pg),
        "eqm1": make_isqam(pg, 128, 64), "eqm2": make_isqam(pg, 256, 128),
        "eqm3": make_isqam(pg, 512, 256), "eqm4": make_isqam(pg, 1024, 512),
        "iqm1": make_iqfm(pg, 64, 64), "iqm2": make_iqfm(pg, 128, 128),
        "iqm3": make_iqfm(pg, 256, 256), "iqm4": make_iqfm(pg, 512, 512),
        "decoder1": make_faspp(pg, 128, 32), "decoder2": make_faspp(pg, 256, 64),
        "decoder3": make_faspp(pg, 512, 128), "decoder4": make_faspp(pg, 512, 256),
        "final_1": make_final(pg, 64, 64), "final_1_d": make_final(pg, 64, 64),
        "final_1_t": make_final(pg, 64, 64),
        "final_4_vdt": make_final(pg, 256, 64), "final_3_vdt": make_final(pg, 128, 64),
        "final_2_vdt": make_final(pg, 64, 32), "final_1_vdt": make_final(pg, 32, 32),
        "refunet": make_refunet(pg, 192 + 1, 64),
    }


def iqfnet_forward(P, rgb, t, d):
    sl_t = swin_stub_fwd(P["swin"], t)
    sl_rgb = swin_stub_fwd(P["swin"], rgb)
    sl_d = swin_stub_fwd(P["swin"], d)
    x1 = [sl_rgb[0], sl_t[0], sl_d[0]]
    x2 = [sl_rgb[1], sl_t[1], sl_d[1]]
    x3 = [sl_rgb[2], sl_t[2], sl_d[2]]
    x4 = [sl_rgb[3], sl_t[3], sl_d[3]]

    x4e, x4s = isqam_fwd(P["eqm4"], x4)
    x4u = [up_true(e, 2) for e in x4e]
    x3e, x3s = isqam_fwd(P["eqm3"], [x3[i] + x4u[i] for i in range(3)])
    x3u = [up_true(e, 2) for e in x3e]
    x2e, x2s = isqam_fwd(P["eqm2"], [x2[i] + x3u[i] for i in range(3)])
    x2u = [up_true(e, 2) for e in x2e]
    x1e, x1s = isqam_fwd(P["eqm1"], [x1[i] + x2u[i] for i in range(3)])
    x1u = [up_true(e, 2) for e in x1e]

    x1e_pred = up_true(final_fwd(P["final_1"], x1u[0]), 2)
    x1e_pred_t = up_true(final_fwd(P["final_1_t"], x1u[1]), 2)
    x1e_pred_d = up_true(final_fwd(P["final_1_d"], x1u[2]), 2)

    x1_vdt = up_true(iqfm_fwd(P["iqm1"], x1e, x1s), 2)
    x2_vdt = up_true(iqfm_fwd(P["iqm2"], x2e, x2s), 2)
    x3_vdt = up_true(iqfm_fwd(P["iqm3"], x3e, x3s), 2)
    x4_vdt = up_true(iqfm_fwd(P["iqm4"], x4e, x4s), 2)

    x4_vdt_f = up_true(faspp_fwd(P["decoder4"], x4_vdt), 2)
    x4_pred_vdt = final_fwd(P["final_4_vdt"], x4_vdt_f)

    x3_vdt = jnp.concatenate([x3_vdt, x4_vdt_f], axis=-1)
    x3_vdt_f = up_true(faspp_fwd(P["decoder3"], x3_vdt), 2)
    x3_pred_vdt = final_fwd(P["final_3_vdt"], x3_vdt_f)

    x2_vdt = jnp.concatenate([x2_vdt, x3_vdt_f], axis=-1)
    x2_vdt_f = up_true(faspp_fwd(P["decoder2"], x2_vdt), 2)
    x2_pred_vdt = final_fwd(P["final_2_vdt"], x2_vdt_f)

    x1_vdt = jnp.concatenate([x1_vdt, x2_vdt_f], axis=-1)
    x1_vdt_f = up_true(faspp_fwd(P["decoder1"], x1_vdt), 2)
    x1_pred_vdt = final_fwd(P["final_1_vdt"], x1_vdt_f)

    x2_pred_vdt = up_true(x2_pred_vdt, 2)
    x3_pred_vdt = up_true(x3_pred_vdt, 4)
    x4_pred_vdt = up_true(x4_pred_vdt, 8)
    x_pred = [x1_pred_vdt, x2_pred_vdt, x3_pred_vdt, x4_pred_vdt]

    x_refine = jnp.concatenate(
        [x1_pred_vdt.astype(jnp.bfloat16),
         up_true(x1e[0] * x1s[0], 4),
         up_true(x1e[1] * x1s[1], 4),
         up_true(x1e[2] * x1s[2], 4)], axis=-1)
    x_refine = refunet_fwd(P["refunet"], x_refine)

    return x1e_pred, x1e_pred_t, x1e_pred_d, x_pred, x_refine


if __name__ == "__main__":
    key = jax.random.PRNGKey(0)
    kp, kr, kt, kd = jax.random.split(key, 4)
    B, S = 2, 32                      # PyTorch input would be NCHW (2, 3, 32, 32)
    rgb = jax.random.normal(kr, (B, S, S, 3), jnp.float32)   # NHWC here
    t = jax.random.normal(kt, (B, S, S, 3), jnp.float32)
    d = jax.random.normal(kd, (B, S, S, 3), jnp.float32)

    params = make_iqfnet_params(kp)
    outs = iqfnet_forward(params, rgb, t, d)
    jax.block_until_ready(outs)
    x1e_pred, x1e_pred_t, x1e_pred_d, x_pred, x_refine = outs

    assert x1e_pred.shape == (B, S, S, 1)
    assert x1e_pred_t.shape == (B, S, S, 1)
    assert x1e_pred_d.shape == (B, S, S, 1)
    assert all(pr.shape == (B, S, S, 1) for pr in x_pred)
    assert x_refine.shape == (B, S, S, 1)
    print("KERNEL_OK")
</pallas_src>

<mosaic_0001>
module attributes {stable_mosaic.version = 11 : i64} {
  func.func @_chan_stats_kernel(%arg0: i32, %arg1: memref<1x1x512xbf16, #tpu.memory_space<vmem>>, %arg2: memref<1x1x2xbf16, #tpu.memory_space<vmem>>) attributes {dimension_semantics = [#tpu.dimension_semantics<parallel>], iteration_bounds = array<i64: 2>, scalar_prefetch = 0 : i64, scratch_operands = 0 : i64, tpu.core_type = #tpu.core_type<tc>, window_params = [{transform_indices = @transform_0, window_bounds = array<i64: 1, 1, 512>}, {transform_indices = @transform_1, window_bounds = array<i64: 1, 1, 2>}]} {
    %c0 = arith.constant 0 : index
    %c0_0 = arith.constant 0 : index
    %c0_1 = arith.constant 0 : index
    %0 = vector.load %arg1[%c0, %c0_0, %c0_1] : memref<1x1x512xbf16, #tpu.memory_space<vmem>>, vector<1x1x512xbf16>
    %1 = vector.shape_cast %0 : vector<1x1x512xbf16> to vector<1x512xbf16>
    %2 = arith.extf %1 : vector<1x512xbf16> to vector<1x512xf32>
    %cst = arith.constant dense<0xFF800000> : vector<1xf32>
    %3 = vector.multi_reduction <maximumf>, %2, %cst [1] : vector<1x512xf32> to vector<1xf32>
    %4 = vector.shape_cast %3 : vector<1xf32> to vector<1x1xf32>
    %cst_2 = arith.constant dense<0.000000e+00> : vector<1xf32>
    %5 = vector.multi_reduction <add>, %2, %cst_2 [1] : vector<1x512xf32> to vector<1xf32>
    %6 = vector.shape_cast %5 : vector<1xf32> to vector<1x1xf32>
    %cst_3 = arith.constant 5.120000e+02 : f32
    %7 = vector.broadcast %cst_3 : f32 to vector<1x1xf32>
    %8 = arith.divf %6, %7 : vector<1x1xf32>
    %9 = tpu.concatenate %4, %8 in 1 : vector<1x1xf32>, vector<1x1xf32> -> vector<1x2xf32>
    %10 = arith.truncf %9 : vector<1x2xf32> to vector<1x2xbf16>
    %c0_4 = arith.constant 0 : index
    %c0_5 = arith.constant 0 : index
    %c0_6 = arith.constant 0 : index
    %11 = vector.load %arg2[%c0_4, %c0_5, %c0_6] : memref<1x1x2xbf16, #tpu.memory_space<vmem>>, vector<1x1x2xbf16>
    %12 = vector.shape_cast %11 : vector<1x1x2xbf16> to vector<1x2xbf16>
    %13 = vector.shape_cast %10 : vector<1x2xbf16> to vector<1x1x2xbf16>
    tpu.vector_store %arg2[%c0_4, %c0_5, %c0_6], %13 {strides = array<i32>} : memref<1x1x2xbf16, #tpu.memory_space<vmem>>, vector<1x1x2xbf16>,
    return
  }
  func.func @transform_0(%arg0: i32) -> (i32, i32, i32) {
    %c0_i32 = arith.constant 0 : i32
    %c0_i32_0 = arith.constant 0 : i32
    %c0_i32_1 = arith.constant 0 : i32
    return %arg0, %c0_i32, %c0_i32_0 : i32, i32, i32
  }
  func.func @transform_1(%arg0: i32) -> (i32, i32, i32) {
    %c0_i32 = arith.constant 0 : i32
    %c0_i32_0 = arith.constant 0 : i32
    %c0_i32_1 = arith.constant 0 : i32
    return %arg0, %c0_i32, %c0_i32_0 : i32, i32, i32
  }
}

</mosaic_0001>

<llo_original>
// kernel: tpu_custom_call.1
$region0: #{tpu_custom_call.1}
  #allocation0 [shape = 'u32[]', space=smem, size = 0x4, offset = 0x4, fixed_abs, tag = 'smem constant byte address 0x4 - core index']
  #allocation1 [shape = 'u32[72,128]{1,0:T(1,128)}', space=vmem, size = 0x9000, scoped, tag = 'internal scratch']
  %s0 = inlined_call_operand.vmem [shape: bf16[2,1,512], index: 0, kind: input, shape index: {}]
  %s1 = inlined_call_operand.vmem [shape: bf16[2,1,2], index: 1, kind: output, shape index: {}]
  %s2 = sld [smem:[#allocation0]]
  $region37: #{tpu_custom_call.1} parent=0
    _
  %s4 = ssub.s32 1, %s2
  %s5 = scalar_select 0, %s4, %s2
  loop: start=0, step=1, limit=4
  $region2: #{tpu_custom_call.1} parent=0 // loop_pre_header
    _
  $region3: #{tpu_custom_call.1} parent=0 // loop_header
    %s7 = sphi 0, %s11
    %p8 = scmp.ge.s32.totalorder %s7, 4
    %s17 = sphi 0, %s19
    %s20 = sphi 0, %s17
    %s21 = sphi 0, %s20
    %s37 = sphi 0, %s21
    %s43 = sphi 0, %s45
    %s46 = sphi 0, %s43
    %s47 = sphi 0, %s46
    %s63 = sphi 0, %s47
  $region4: #{tpu_custom_call.1} parent=0 // loop_header_branch
    %10 = sbr.rel (%p8) target = $region8
  $region5: #{tpu_custom_call.1} parent=0 // loop_body
    %s12 = ssub.s32 %s7, 1
    %s13 = ssub.s32 %s7, 2
    %s14 = sadd.s32 %s7, 1
    %s15 = ssub.s32 %s7, %s14
    %p16 = scmp.eq.s32.totalorder %s15, 0
    %s18 = sadd.s32 %s17, 1
    %s19 = scalar_select %p16, %s17, %s18
    %p22 = pneg %p16
    %p23 = scmp.eq.s32.totalorder %s7, 1
    %p24 = por %p22, %p23
    %p25 = scmp.ne.s32.totalorder %s17, %s20
    %p26 = scmp.eq.s32.totalorder %s7, 0
    %p27 = por %p25, %p26
    %p28 = scmp.ne.s32.totalorder %s17, %s20
    %p29 = scmp.eq.s32.totalorder %s12, 1
    %p30 = por %p28, %p29
    %p31 = scmp.ne.s32.totalorder %s20, %s21
    %p32 = scmp.eq.s32.totalorder %s12, 0
    %p33 = por %p31, %p32
    %p34 = scmp.ne.s32.totalorder %s20, %s21
    %p35 = scmp.eq.s32.totalorder %s13, 1
    %p36 = por %p34, %p35
    %p38 = scmp.ne.s32.totalorder %s21, %s37
    %p39 = scmp.eq.s32.totalorder %s13, 0
    %p40 = por %p38, %p39
    %s41 = ssub.s32 %s7, %s14
    %p42 = scmp.eq.s32.totalorder %s41, 0
    %s44 = sadd.s32 %s43, 1
    %s45 = scalar_select %p42, %s43, %s44
    %p48 = pneg %p42
    %p49 = scmp.eq.s32.totalorder %s7, 1
    %p50 = por %p48, %p49
    %p51 = scmp.ne.s32.totalorder %s43, %s46
    %p52 = scmp.eq.s32.totalorder %s7, 0
    %p53 = por %p51, %p52
    %p54 = scmp.ne.s32.totalorder %s43, %s46
    %p55 = scmp.eq.s32.totalorder %s12, 1
    %p56 = por %p54, %p55
    %p57 = scmp.ne.s32.totalorder %s46, %s47
    %p58 = scmp.eq.s32.totalorder %s12, 0
    %p59 = por %p57, %p58
    %p60 = scmp.ne.s32.totalorder %s46, %s47
    %p61 = scmp.eq.s32.totalorder %s13, 1
    %p62 = por %p60, %p61
    %p64 = scmp.ne.s32.totalorder %s47, %s63
    %p65 = scmp.eq.s32.totalorder %s13, 0
    %p66 = por %p64, %p65
    %p67 = scmp.le.s32.totalorder 1, %s7
    %p68 = scmp.lt.s32.totalorder %s7, 3
    %p69 = pnand %p67, %p68
    %p70 = pneg %p69
    // Predicated region
    $region9: #{tpu_custom_call.1} parent=5 // pred_check
      _
    $region10: #{tpu_custom_call.1} parent=5 // pred_check_branch
      %72 = sbr.rel (%p69) target = $region12
    $region11: #{tpu_custom_call.1} parent=5 // pred_region
      %s73 = ssub.s32 %s7, 1
    $region12: #{tpu_custom_call.1} parent=5 // pred_fallthru
      _
    %p74 = scmp.lt.s32.totalorder %s7, 2
    // Predicated region
    $region13: #{tpu_custom_call.1} parent=5 // pred_check
      %p75 = pneg %p74
    $region14: #{tpu_custom_call.1} parent=5 // pred_check_branch
      %77 = sbr.rel (%p75) target = $region16
    $region15: #{tpu_custom_call.1} parent=5 // pred_region
      // Predicated region
      $region17: #{tpu_custom_call.1} parent=15 // pred_check
        %p78 = pneg %p27
      $region18: #{tpu_custom_call.1} parent=15 // pred_check_branch
        %80 = sbr.rel (%p78) target = $region20
      $region19: #{tpu_custom_call.1} parent=15 // pred_region
        %p81 = scmp.lt.s32.totalorder %s7, 1
        %s82 = scalar_select %p81, %s7, 1
        %s83 = smul.addr %s82, 4
        %s84 = scalar_lea.vmem %s0, %s83
      $region20: #{tpu_custom_call.1} parent=15 // pred_fallthru
        _
    $region16: #{tpu_custom_call.1} parent=5 // pred_fallthru
      _
    %p85 = scmp.le.s32.totalorder 1, %s7
    %p86 = scmp.lt.s32.totalorder %s7, 3
    %p87 = pnand %p85, %p86
    %p88 = pneg %p87
    // Predicated region
    $region21: #{tpu_custom_call.1} parent=5 // pred_check
      _
    $region22: #{tpu_custom_call.1} parent=5 // pred_check_branch
      %90 = sbr.rel (%p87) target = $region24
    $region23: #{tpu_custom_call.1} parent=5 // pred_region
      %s91 = ssub.s32 %s7, 1
      %p92 = scmp.lt.s32.totalorder %s12, 1
      %s93 = scalar_select %p92, %s12, 1
      %s94 = smul.addr %s93, 4
      %s95 = scalar_lea.vmem %s0, %s94
      %p96 = pneg %p33
      %p97 = pneg %p30
      %p98 = pneg %p59
      %p99 = pneg %p56
      %p100 = scmp.lt.s32.totalorder %s12, 1
      %s101 = scalar_select %p100, %s12, 1
      %s102 = scalar_lea.vmem %s1, %s101
      %p103 = scmp.lt.s32.totalorder %s12, 1
      %s104 = scalar_select %p103, %s12, 1
      %s105 = smul.addr %s104, 4
      %s106 = scalar_lea.vmem %s0, %s105
      %p107 = scmp.lt.s32.totalorder %s12, 1
      %s108 = scalar_select %p107, %s12, 1
      %s109 = scalar_lea.vmem %s1, %s108
      %v110 = vld [vmem:[%s106] sm:$0xf]
      %v111 = vunpack.c.l.bf16 %v110
      %v113 = vperm.slane %v111, 0
      %v114 = vperm.slane %v111, 2
      %v115 = vperm.slane %v111, 4
      %v116 = vperm.slane %v111, 6
      %vm121 = vcmask 1040384
      %v122 = vsel %vm121, %v113, -inf
      %v123 = vsel %vm121, %v114, -inf
      %v124 = vsel %vm121, %v115, -inf
      %v125 = vsel %vm121, %v116, -inf
      %v126 = vmax.f32 %v122, %v123
      %v127 = vmax.f32 %v124, %v125
      %v128 = vmax.f32 %v126, %v127
      %129 = vmax.xlane.f32.xlu0 %v128
      %v130 = vpop.xlane.xlu0 %129
      %v131 = vsel %vm121, %v113, 0.0
      %v132 = vsel %vm121, %v114, 0.0
      %v133 = vadd.f32 %v131, %v132
      %v134 = vsel %vm121, %v115, 0.0
      %v135 = vadd.f32 %v133, %v134
      %v136 = vsel %vm121, %v116, 0.0
      %v137 = vadd.f32 %v135, %v136
      %138 = vadd.xlane.f32.xlu0 %v137
      %v139 = vpop.xlane.xlu0 %138
      %v140 = vrcp.pop 512.0
      %v141 = vmul.f32 512.0, %v140
      %v142 = vsub.f32 1.0, %v141
      %v143 = vmul.f32 %v140, %v142
      %v144 = vadd.f32 %v140, %v143
      %vm145 = vweird.f32 %v140
      %v146 = vsel %vm145, %v140, %v144
      %v147 = vmul.f32 %v139, %v146
      %vm148 = vcmask 7168
      %v149 = vsel %vm148, %v130, %v147
      %v150 = vpack.c.bf16 %v149, %v149
      %vm151 = vcmask 8192
      %vm152 = vsmask.f32 256
      %vm153 = vmand %vm151, %vm152
      %v154 = vld [vmem:[%s109] sm:$0x1]
      %v155 = vsel %vm153, %v150, %v154
      %156 = vst [vmem:[%s109] sm:$0x1] %v155
      %p157 = scmp.lt.s32.totalorder %s12, 1
      %s158 = scalar_select %p157, %s12, 1
      %s159 = scalar_lea.vmem %s1, %s158
      // Predicated region
      $region25: #{tpu_custom_call.1} parent=23 // pred_check
        %p160 = pneg %p56
      $region26: #{tpu_custom_call.1} parent=23 // pred_check_branch
        %162 = sbr.rel (%p160) target = $region28
      $region27: #{tpu_custom_call.1} parent=23 // pred_region
        _
      $region28: #{tpu_custom_call.1} parent=23 // pred_fallthru
        _
    $region24: #{tpu_custom_call.1} parent=5 // pred_fallthru
      _
    %p163 = scmp.le.s32.totalorder 2, %s7
    // Predicated region
    $region29: #{tpu_custom_call.1} parent=5 // pred_check
      %p164 = pneg %p163
    $region30: #{tpu_custom_call.1} parent=5 // pred_check_branch
      %166 = sbr.rel (%p164) target = $region32
    $region31: #{tpu_custom_call.1} parent=5 // pred_region
      %s167 = ssub.s32 %s7, 2
      // Predicated region
      $region33: #{tpu_custom_call.1} parent=31 // pred_check
        %p168 = pneg %p62
      $region34: #{tpu_custom_call.1} parent=31 // pred_check_branch
        %170 = sbr.rel (%p168) target = $region36
      $region35: #{tpu_custom_call.1} parent=31 // pred_region
        %p171 = scmp.lt.s32.totalorder %s13, 1
        %s172 = scalar_select %p171, %s13, 1
        %s173 = scalar_lea.vmem %s1, %s172
      $region36: #{tpu_custom_call.1} parent=31 // pred_fallthru
        _
    $region32: #{tpu_custom_call.1} parent=5 // pred_fallthru
      _
  $region6: #{tpu_custom_call.1} parent=0 // loop_footer
    %s11 = sadd.s32 1, %s7
  $region7: #{tpu_custom_call.1} parent=0 // loop_footer_branch
    %6 = sbr.rel target = $region3
  $region8: #{tpu_custom_call.1} parent=0 // loop_exit
    _

</llo_original>
